<compile_context>
chip_gen: v7x
topology: tpu7x:2x2x1
jax: 0.10.0
libtpu: 0.0.40
codegen_flags: <defaults>
</compile_context>

<pallas_src>
import functools

import jax
import jax.numpy as jnp
from jax import lax
from jax.experimental import pallas as pl
from jax.experimental.pallas import tpu as pltpu


def _round_up(a: int, b: int) -> int:
    return ((a + b - 1) // b) * b


# ----------------------------------------------------------------------------
# Pallas kernel: fused 2-layer MLP encoder
#   - compute is lane-dense (tokens on the 128-lane axis) for VPU/EUP work
#   - output is produced and stored in the native token-major layout
# ----------------------------------------------------------------------------
def _encoder_kernel(x_ref, w1t_ref, b1t_ref, w2_ref, b2r_ref, out_ref):
    # x_ref   : [n_chunks, D_in, CL]    io_dtype   (tokens on lanes per chunk)
    # w1t_ref : [H, D_in]               f32        (resident)
    # b1t_ref : [H, 1]                  f32        (resident)
    # w2_ref  : [H, D_lat]              f32        (resident)
    # b2r_ref : [1, D_lat]              f32        (resident)
    # out_ref : [n_chunks, CL, D_lat]   io_dtype   (native token-major layout)
    n_chunks, d_in, _ = x_ref.shape

    # Weights are tiny; load once, keep in vregs across the chunk loop.
    w1t = w1t_ref[...]
    b1t = b1t_ref[...]
    w2 = w2_ref[...]
    b2r = b2r_ref[...]

    # Chunked over the token/lane axis so live vregs stay bounded regardless
    # of how large the grid tile (n_chunks * CL tokens) is.
    @pl.loop(0, n_chunks)
    def _(c):
        xk = x_ref[c].astype(jnp.float32)           # [D_in, CL]

        # Layer 1: K = D_in (=3) is tiny -> VPU broadcast-FMAs (MXU stays free
        # for layer 2, and no masking concerns for a K<8 matmul).
        h = w1t[:, 0:1] * xk[0:1, :]                # [H, CL]
        for k in range(1, d_in):                    # static, trace-time unroll
            h = h + w1t[:, k:k + 1] * xk[k:k + 1, :]

        # TODO(synk): PyTorch nn.GELU defaults to the exact erf form; we use
        # the tanh approximation (fewer VALU ops + EUP tanh), matching the
        # in-script reference.
        h = jax.nn.gelu(h + b1t)                    # [H, CL], lane-dense

        # Layer 2 on the MXU in LHS-transposed (TN) form:
        #   z[c, d] = sum_h h[h, c] * w2[h, d]   -> [CL, D_lat]
        # This yields the native token-major tile directly (no wrapper-side
        # or in-kernel transpose of the output).
        z = lax.dot_general(h, w2, (((0,), (0,)), ((), ())),
                            preferred_element_type=jnp.float32)
        out_ref[c] = (z + b2r).astype(out_ref.dtype)


@functools.partial(jax.jit, static_argnames=("tn", "cl", "io_dtype"))
def encoder_mlp(x2d, w1, b1, w2, b2, *, tn=8192, cl=512, io_dtype=jnp.bfloat16):
    """Fused encoder MLP on a [N, D_in] slab of tokens -> [N, D_lat].

    tn: tokens per grid step (amortizes the ~0.35us/step cost).
    cl: lane-chunk size inside the kernel (bounds vreg live ranges).
    io_dtype: HBM-facing dtype (bf16 halves output traffic; compute stays f32).
    """
    n, d_in = x2d.shape
    h_dim = w1.shape[1]
    d_lat = w2.shape[1]
    assert tn % cl == 0 and cl % 128 == 0

    # Shrink the grid tile for small problems (never pad a tiny N up to 8K).
    tn_eff = min(tn, _round_up(max(n, 1), cl))
    n_pad = _round_up(n, tn_eff)
    nc_total = n_pad // cl          # total lane chunks
    nc_tile = tn_eff // cl          # lane chunks per grid step

    # Single fused prep pass over the small (12 B/token) input:
    # cast + pad + chunk-split + per-chunk transpose -> [nc_total, D_in, CL].
    x_p = jnp.pad(x2d.astype(io_dtype), ((0, n_pad - n), (0, 0)))
    x_3d = jnp.transpose(x_p.reshape(nc_total, cl, d_in), (0, 2, 1))

    w1t = jnp.transpose(w1).astype(jnp.float32)            # [H, D_in]
    b1t = jnp.reshape(b1, (h_dim, 1)).astype(jnp.float32)  # [H, 1]
    w2f = w2.astype(jnp.float32)                           # [H, D_lat]
    b2r = jnp.reshape(b2, (1, d_lat)).astype(jnp.float32)  # [1, D_lat]

    # Size the VMEM limit from the actual double-buffered footprint
    # (never request the whole 64 MiB of a v7x TensorCore).
    itemsize = jnp.dtype(io_dtype).itemsize
    sub = 8 * (4 // itemsize)                     # sublane packing (f32:8, bf16:16)
    x_blk = nc_tile * _round_up(d_in, sub) * cl * itemsize
    out_blk = nc_tile * cl * _round_up(d_lat, 128) * itemsize
    vmem_limit = int(max(2 * (x_blk + out_blk) + (8 << 20), 16 << 20))

    cost = pl.CostEstimate(
        flops=2 * n_pad * (d_in * h_dim + h_dim * d_lat),
        transcendentals=n_pad * h_dim,
        bytes_accessed=itemsize * n_pad * (d_in + d_lat)
        + 4 * (d_in * h_dim + h_dim + h_dim * d_lat + d_lat),
    )

    out3d = pl.pallas_call(
        _encoder_kernel,
        out_shape=jax.ShapeDtypeStruct((nc_total, cl, d_lat), io_dtype),
        grid=(n_pad // tn_eff,),
        in_specs=[
            # x: tiled along the (leading) chunk axis -> software pipelined.
            pl.BlockSpec((nc_tile, d_in, cl), lambda i: (i, 0, 0)),
            # Weights / biases: constant block index -> stay resident in VMEM.
            pl.BlockSpec((h_dim, d_in), lambda i: (0, 0)),
            pl.BlockSpec((h_dim, 1), lambda i: (0, 0)),
            pl.BlockSpec((h_dim, d_lat), lambda i: (0, 0)),
            pl.BlockSpec((1, d_lat), lambda i: (0, 0)),
        ],
        out_specs=pl.BlockSpec((nc_tile, cl, d_lat), lambda i: (i, 0, 0)),
        compiler_params=pltpu.CompilerParams(
            # TODO(synk): on v7x, pltpu.CORE_PARALLEL (or pl.core_map) can be
            # used if "parallel" alone does not shard the token axis across
            # the two TensorCores.
            dimension_semantics=("parallel",),
            vmem_limit_bytes=vmem_limit,
        ),
        cost_estimate=cost,
    )(x_3d, w1t, b1t, w2f, b2r)

    # Merge chunks (free row-major reshape) and drop token padding.
    return out3d.reshape(n_pad, d_lat)[:n]


# ----------------------------------------------------------------------------
# Autoencoder (forward == encoder only, matching the reference module)
# ----------------------------------------------------------------------------
class AutoencoderPallas:
    def __init__(self, d_in=3, d_hidden=32, d_latent=16, key=None):
        if key is None:
            key = jax.random.PRNGKey(0)
        k1, k2, k3, k4 = jax.random.split(key, 4)
        s1 = 1.0 / jnp.sqrt(d_in)
        s2 = 1.0 / jnp.sqrt(d_hidden)
        self.w1 = jax.random.uniform(k1, (d_in, d_hidden), jnp.float32, -s1, s1)
        self.b1 = jax.random.uniform(k2, (1, d_hidden), jnp.float32, -s1, s1)
        self.w2 = jax.random.uniform(k3, (d_hidden, d_latent), jnp.float32, -s2, s2)
        self.b2 = jax.random.uniform(k4, (1, d_latent), jnp.float32, -s2, s2)
        self.d_latent = d_latent
        # TODO(synk): Decoder / Registration / Losses are constructed but never
        # invoked in the reference forward(); only the encoder path exists here.

    def encoder(self, batch):
        x = batch["structure"]                       # [B, L, D_in]
        b, l, _ = x.shape
        x2d = x.reshape(b * l, x.shape[-1])
        enc = encoder_mlp(x2d, self.w1, self.b1, self.w2, self.b2)
        batch = dict(batch)
        # TODO(synk): encoding is returned in bf16 (HBM-friendly); cast to f32
        # here if exact dtype parity with the PyTorch module is required.
        batch["encoding"] = enc.reshape(b, l, self.d_latent)
        return batch

    def forward(self, batch):
        # Mirrors the PyTorch module: only the encoder runs in forward().
        batch = self.encoder(batch)
        return batch


# ----------------------------------------------------------------------------
# Pure-JAX references for correctness checking
# ----------------------------------------------------------------------------
def _ref_encoder2d(x2d, w1, b1, w2, b2):
    hp = jax.lax.Precision.HIGHEST
    h = jax.nn.gelu(jnp.dot(x2d, w1, precision=hp) + b1)
    return jnp.dot(h, w2, precision=hp) + b2


def _ref_encoder(x, w1, b1, w2, b2):
    b, l, d_in = x.shape
    z = _ref_encoder2d(x.reshape(b * l, d_in), w1, b1, w2, b2)
    return z.reshape(b, l, w2.shape[1])


if __name__ == "__main__":
    key = jax.random.PRNGKey(0)
    k_model, k_data, k_data2 = jax.random.split(key, 3)

    B, L, D_IN = 2, 8, 3          # sequence of 3-D coordinates (bio2token-like)
    model = AutoencoderPallas(d_in=D_IN, d_hidden=32, d_latent=16, key=k_model)

    # Main forward path (bf16 I/O default): loose tolerance appropriate for bf16.
    coords = jax.random.normal(k_data, (B, L, D_IN), jnp.float32)
    batch = {"structure": coords}
    out_batch = model.forward(batch)
    enc = jax.block_until_ready(out_batch["encoding"])
    ref = _ref_encoder(coords, model.w1, model.b1, model.w2, model.b2)
    assert enc.shape == (B, L, 16), enc.shape
    assert jnp.allclose(enc.astype(jnp.float32), ref, atol=3e-2, rtol=3e-2), \
        "bf16 path mismatch vs reference"

    # Exact-numerics check on the f32 I/O path; also exercises multi-tile grid,
    # multi-chunk inner loop and a padded last tile.
    n2 = 1200
    x2 = jax.random.normal(k_data2, (n2, D_IN), jnp.float32)
    enc2 = jax.block_until_ready(
        encoder_mlp(x2, model.w1, model.b1, model.w2, model.b2,
                    tn=1024, cl=512, io_dtype=jnp.float32))
    ref2 = _ref_encoder2d(x2, model.w1, model.b1, model.w2, model.b2)
    assert enc2.shape == (n2, 16), enc2.shape
    assert jnp.allclose(enc2, ref2, atol=1e-4, rtol=1e-4), "f32 tiled mismatch"

    print("KERNEL_OK")
</pallas_src>

<mosaic_0001>
module attributes {stable_mosaic.version = 11 : i64} {
  func.func @_encoder_kernel(%arg0: i32, %arg1: memref<1x3x512xbf16, #tpu.memory_space<vmem>>, %arg2: memref<32x3xf32, #tpu.memory_space<vmem>>, %arg3: memref<32x1xf32, #tpu.memory_space<vmem>>, %arg4: memref<32x16xf32, #tpu.memory_space<vmem>>, %arg5: memref<1x16xf32, #tpu.memory_space<vmem>>, %arg6: memref<1x512x16xbf16, #tpu.memory_space<vmem>>) attributes {dimension_semantics = [#tpu.dimension_semantics<parallel>], iteration_bounds = array<i64: 1>, scalar_prefetch = 0 : i64, scratch_operands = 0 : i64, tpu.core_type = #tpu.core_type<tc>, window_params = [{transform_indices = @transform_0, window_bounds = array<i64: 1, 3, 512>}, {pipeline_mode = #tpu.pipeline_mode<synchronous>, transform_indices = @transform_1, window_bounds = array<i64: 32, 3>}, {pipeline_mode = #tpu.pipeline_mode<synchronous>, transform_indices = @transform_2, window_bounds = array<i64: 32, 1>}, {pipeline_mode = #tpu.pipeline_mode<synchronous>, transform_indices = @transform_3, window_bounds = array<i64: 32, 16>}, {pipeline_mode = #tpu.pipeline_mode<synchronous>, transform_indices = @transform_4, window_bounds = array<i64: 1, 16>}, {transform_indices = @transform_5, window_bounds = array<i64: 1, 512, 16>}]} {
    %c0 = arith.constant 0 : index
    %c0_0 = arith.constant 0 : index
    %0 = vector.load %arg2[%c0, %c0_0] : memref<32x3xf32, #tpu.memory_space<vmem>>, vector<32x3xf32>
    %c0_1 = arith.constant 0 : index
    %c0_2 = arith.constant 0 : index
    %1 = vector.load %arg3[%c0_1, %c0_2] : memref<32x1xf32, #tpu.memory_space<vmem>>, vector<32x1xf32>
    %c0_3 = arith.constant 0 : index
    %c0_4 = arith.constant 0 : index
    %2 = vector.load %arg4[%c0_3, %c0_4] : memref<32x16xf32, #tpu.memory_space<vmem>>, vector<32x16xf32>
    %c0_5 = arith.constant 0 : index
    %c0_6 = arith.constant 0 : index
    %3 = vector.load %arg5[%c0_5, %c0_6] : memref<1x16xf32, #tpu.memory_space<vmem>>, vector<1x16xf32>
    %c0_i32 = arith.constant 0 : i32
    %c1_i32 = arith.constant 1 : i32
    %4 = arith.muli %c0_i32, %c1_i32 : i32
    %c0_i32_7 = arith.constant 0 : i32
    %5 = arith.addi %c0_i32_7, %4 : i32
    %6 = arith.index_cast %5 : i32 to index
    %c0_8 = arith.constant 0 : index
    %c0_9 = arith.constant 0 : index
    %7 = vector.load %arg1[%6, %c0_8, %c0_9] : memref<1x3x512xbf16, #tpu.memory_space<vmem>>, vector<1x3x512xbf16>
    %8 = vector.shape_cast %7 : vector<1x3x512xbf16> to vector<3x512xbf16>
    %9 = arith.extf %8 : vector<3x512xbf16> to vector<3x512xf32>
    %10 = vector.extract_strided_slice %0 {offsets = [0, 0], sizes = [32, 1], strides = [1, 1]} : vector<32x3xf32> to vector<32x1xf32>
    %11 = vector.extract_strided_slice %9 {offsets = [0, 0], sizes = [1, 512], strides = [1, 1]} : vector<3x512xf32> to vector<1x512xf32>
    %12 = vector.broadcast %10 : vector<32x1xf32> to vector<32x512xf32>
    %13 = vector.broadcast %11 : vector<1x512xf32> to vector<32x512xf32>
    %14 = arith.mulf %12, %13 : vector<32x512xf32>
    %15 = vector.extract_strided_slice %0 {offsets = [0, 1], sizes = [32, 1], strides = [1, 1]} : vector<32x3xf32> to vector<32x1xf32>
    %16 = vector.extract_strided_slice %9 {offsets = [1, 0], sizes = [1, 512], strides = [1, 1]} : vector<3x512xf32> to vector<1x512xf32>
    %17 = vector.broadcast %15 : vector<32x1xf32> to vector<32x512xf32>
    %18 = vector.broadcast %16 : vector<1x512xf32> to vector<32x512xf32>
    %19 = arith.mulf %17, %18 : vector<32x512xf32>
    %20 = arith.addf %14, %19 : vector<32x512xf32>
    %21 = vector.extract_strided_slice %0 {offsets = [0, 2], sizes = [32, 1], strides = [1, 1]} : vector<32x3xf32> to vector<32x1xf32>
    %22 = vector.extract_strided_slice %9 {offsets = [2, 0], sizes = [1, 512], strides = [1, 1]} : vector<3x512xf32> to vector<1x512xf32>
    %23 = vector.broadcast %21 : vector<32x1xf32> to vector<32x512xf32>
    %24 = vector.broadcast %22 : vector<1x512xf32> to vector<32x512xf32>
    %25 = arith.mulf %23, %24 : vector<32x512xf32>
    %26 = arith.addf %20, %25 : vector<32x512xf32>
    %27 = vector.broadcast %1 : vector<32x1xf32> to vector<32x512xf32>
    %28 = arith.addf %26, %27 : vector<32x512xf32>
    %29 = arith.mulf %28, %28 : vector<32x512xf32>
    %30 = arith.mulf %28, %29 : vector<32x512xf32>
    %cst = arith.constant 4.471500e-02 : f32
    %31 = vector.broadcast %cst : f32 to vector<32x512xf32>
    %32 = arith.mulf %31, %30 : vector<32x512xf32>
    %33 = arith.addf %28, %32 : vector<32x512xf32>
    %cst_10 = arith.constant 0.797884583 : f32
    %34 = vector.broadcast %cst_10 : f32 to vector<32x512xf32>
    %35 = arith.mulf %34, %33 : vector<32x512xf32>
    %36 = math.tanh %35 : vector<32x512xf32>
    %cst_11 = arith.constant 1.000000e+00 : f32
    %37 = vector.broadcast %cst_11 : f32 to vector<32x512xf32>
    %38 = arith.addf %37, %36 : vector<32x512xf32>
    %cst_12 = arith.constant 5.000000e-01 : f32
    %39 = vector.broadcast %cst_12 : f32 to vector<32x512xf32>
    %40 = arith.mulf %39, %38 : vector<32x512xf32>
    %41 = arith.mulf %28, %40 : vector<32x512xf32>
    %cst_13 = arith.constant dense<0.000000e+00> : vector<512x16xf32>
    %42 = tpu.matmul %41, %2, %cst_13 {dimension_numbers = #tpu.dot_dimension_numbers<[0], [0], [1], [1], [0, 1, 1, 1], [], []>} : vector<32x512xf32>, vector<32x16xf32>, vector<512x16xf32> -> vector<512x16xf32>
    %43 = vector.broadcast %3 : vector<1x16xf32> to vector<512x16xf32>
    %44 = arith.addf %42, %43 : vector<512x16xf32>
    %45 = arith.truncf %44 : vector<512x16xf32> to vector<512x16xbf16>
    %46 = arith.index_cast %5 : i32 to index
    %c0_14 = arith.constant 0 : index
    %c0_15 = arith.constant 0 : index
    %47 = vector.load %arg6[%46, %c0_14, %c0_15] : memref<1x512x16xbf16, #tpu.memory_space<vmem>>, vector<1x512x16xbf16>
    %48 = vector.shape_cast %47 : vector<1x512x16xbf16> to vector<512x16xbf16>
    %49 = vector.shape_cast %45 : vector<512x16xbf16> to vector<1x512x16xbf16>
    tpu.vector_store %arg6[%46, %c0_14, %c0_15], %49 {strides = array<i32>} : memref<1x512x16xbf16, #tpu.memory_space<vmem>>, vector<1x512x16xbf16>,
    %c1_i32_16 = arith.constant 1 : i32
    return
  }
  func.func @transform_0(%arg0: i32) -> (i32, i32, i32) {
    %c0_i32 = arith.constant 0 : i32
    %c0_i32_0 = arith.constant 0 : i32
    %c0_i32_1 = arith.constant 0 : i32
    return %arg0, %c0_i32, %c0_i32_0 : i32, i32, i32
  }
  func.func @transform_1(%arg0: i32) -> (i32, i32) {
    %c0_i32 = arith.constant 0 : i32
    %c0_i32_0 = arith.constant 0 : i32
    %c0_i32_1 = arith.constant 0 : i32
    return %c0_i32, %c0_i32_0 : i32, i32
  }
  func.func @transform_2(%arg0: i32) -> (i32, i32) {
    %c0_i32 = arith.constant 0 : i32
    %c0_i32_0 = arith.constant 0 : i32
    %c0_i32_1 = arith.constant 0 : i32
    return %c0_i32, %c0_i32_0 : i32, i32
  }
  func.func @transform_3(%arg0: i32) -> (i32, i32) {
    %c0_i32 = arith.constant 0 : i32
    %c0_i32_0 = arith.constant 0 : i32
    %c0_i32_1 = arith.constant 0 : i32
    return %c0_i32, %c0_i32_0 : i32, i32
  }
  func.func @transform_4(%arg0: i32) -> (i32, i32) {
    %c0_i32 = arith.constant 0 : i32
    %c0_i32_0 = arith.constant 0 : i32
    %c0_i32_1 = arith.constant 0 : i32
    return %c0_i32, %c0_i32_0 : i32, i32
  }
  func.func @transform_5(%arg0: i32) -> (i32, i32, i32) {
    %c0_i32 = arith.constant 0 : i32
    %c0_i32_0 = arith.constant 0 : i32
    %c0_i32_1 = arith.constant 0 : i32
    return %arg0, %c0_i32, %c0_i32_0 : i32, i32, i32
  }
}

</mosaic_0001>

<llo_original>
// kernel: encoder_mlp.1
$region0: #{encoder_mlp.1}
  #allocation0 [shape = 'u32[]', space=smem, size = 0x4, offset = 0x4, fixed_abs, tag = 'smem constant byte address 0x4 - core index']
  #allocation1 [shape = 'u32[144,128]{1,0:T(1,128)}', space=vmem, size = 0x12000, scoped, tag = 'internal scratch']
  %s0 = inlined_call_operand.vmem [shape: bf16[1,3,512], index: 0, kind: input, shape index: {}]
  %s1 = inlined_call_operand.vmem [shape: f32[32,3], index: 1, kind: input, shape index: {}]
  %s2 = inlined_call_operand.vmem [shape: f32[32,1], index: 2, kind: input, shape index: {}]
  %s3 = inlined_call_operand.vmem [shape: f32[32,16], index: 3, kind: input, shape index: {}]
  %s4 = inlined_call_operand.vmem [shape: f32[1,16], index: 4, kind: input, shape index: {}]
  %s5 = inlined_call_operand.vmem [shape: bf16[1,512,16], index: 5, kind: output, shape index: {}]
  %s6 = sld [smem:[#allocation0]]
  $region30: #{encoder_mlp.1} parent=0
    _
  %s8 = ssub.s32 1, %s6
  %s9 = scalar_select 0, %s8, %s6
  // Predicated region
  $region2: #{encoder_mlp.1} parent=0 // pred_check
    _
  $region3: #{encoder_mlp.1} parent=0 // pred_check_branch
    %11 = sbr.rel (0) target = $region5
  $region4: #{encoder_mlp.1} parent=0 // pred_region
    _
  $region5: #{encoder_mlp.1} parent=0 // pred_fallthru
    _
  // Predicated region
  $region6: #{encoder_mlp.1} parent=0 // pred_check
    _
  $region7: #{encoder_mlp.1} parent=0 // pred_check_branch
    %13 = sbr.rel (0) target = $region9
  $region8: #{encoder_mlp.1} parent=0 // pred_region
    _
  $region9: #{encoder_mlp.1} parent=0 // pred_fallthru
    _
  // Predicated region
  $region10: #{encoder_mlp.1} parent=0 // pred_check
    _
  $region11: #{encoder_mlp.1} parent=0 // pred_check_branch
    %15 = sbr.rel (0) target = $region13
  $region12: #{encoder_mlp.1} parent=0 // pred_region
    _
  $region13: #{encoder_mlp.1} parent=0 // pred_fallthru
    _
  // Predicated region
  $region14: #{encoder_mlp.1} parent=0 // pred_check
    _
  $region15: #{encoder_mlp.1} parent=0 // pred_check_branch
    %17 = sbr.rel (0) target = $region17
  $region16: #{encoder_mlp.1} parent=0 // pred_region
    _
  $region17: #{encoder_mlp.1} parent=0 // pred_fallthru
    _
  // Predicated region
  $region18: #{encoder_mlp.1} parent=0 // pred_check
    _
  $region19: #{encoder_mlp.1} parent=0 // pred_check_branch
    %19 = sbr.rel (0) target = $region21
  $region20: #{encoder_mlp.1} parent=0 // pred_region
    _
  $region21: #{encoder_mlp.1} parent=0 // pred_fallthru
    _
  %v20 = vld [vmem:[%s1] sm:$0xff]
  %v21 = vld [vmem:[%s1 + $0x8] sm:$0xff]
  %v22 = vld [vmem:[%s1 + $0x10] sm:$0xff]
  %v23 = vld [vmem:[%s1 + $0x18] sm:$0xff]
  %v24 = vld [vmem:[%s2] sm:$0xff]
  %v25 = vld [vmem:[%s2 + $0x8] sm:$0xff]
  %v26 = vld [vmem:[%s2 + $0x10] sm:$0xff]
  %v27 = vld [vmem:[%s2 + $0x18] sm:$0xff]
  %v28 = vld [vmem:[%s3] sm:$0xff]
  %v29 = vld [vmem:[%s3 + $0x8] sm:$0xff]
  %v30 = vld [vmem:[%s3 + $0x10] sm:$0xff]
  %v31 = vld [vmem:[%s3 + $0x18] sm:$0xff]
  %v32 = vld [vmem:[%s4] sm:$0x1]
  %v33 = vld [vmem:[%s0] sm:$0xff]
  %v34 = vunpack.c.l.bf16 %v33
  %v35 = vunpack.c.h.bf16 %v33
  %37 = vset.pattern.permute.xlu0 0
  %38 = vperm.xlu0 %37, %v20
  %v39 = vpop.permute.xlu0 %38
  %42 = vset.pattern.permute.xlu0 0
  %43 = vperm.xlu0 %42, %v21
  %v44 = vpop.permute.xlu0 %43
  %47 = vset.pattern.permute.xlu0 0
  %48 = vperm.xlu0 %47, %v22
  %v49 = vpop.permute.xlu0 %48
  %52 = vset.pattern.permute.xlu0 0
  %53 = vperm.xlu0 %52, %v23
  %v54 = vpop.permute.xlu0 %53
  %v58 = vlaneseq
  %v59 = vshrl.u32 %v58, 7
  %v60 = vsub.s32 0, %v59
  %v61 = vrot.slane %v34, %v60
  %v62 = vlaneseq
  %v63 = vshrl.u32 %v62, 7
  %v64 = vsub.s32 4, %v63
  %v65 = vrot.slane %v34, %v64
  %v66 = vlaneseq
  %v67 = vshrl.u32 %v66, 7
  %v68 = vsub.s32 0, %v67
  %v69 = vrot.slane %v35, %v68
  %v70 = vlaneseq
  %v71 = vshrl.u32 %v70, 7
  %v72 = vsub.s32 4, %v71
  %v73 = vrot.slane %v35, %v72
  %v78 = vlaneseq
  %v79 = vshrl.u32 %v78, 7
  %v80 = vsub.s32 0, %v79
  %v81 = vrot.slane %v61, %v80
  %v82 = vlaneseq
  %v83 = vshrl.u32 %v82, 7
  %v84 = vsub.s32 0, %v83
  %v85 = vrot.slane %v65, %v84
  %v86 = vlaneseq
  %v87 = vshrl.u32 %v86, 7
  %v88 = vsub.s32 0, %v87
  %v89 = vrot.slane %v69, %v88
  %v90 = vlaneseq
  %v91 = vshrl.u32 %v90, 7
  %v92 = vsub.s32 0, %v91
  %v93 = vrot.slane %v73, %v92
  %v94 = vmul.f32 %v39, %v81
  %v95 = vmul.f32 %v39, %v85
  %v96 = vmul.f32 %v39, %v89
  %v97 = vmul.f32 %v39, %v93
  %v98 = vmul.f32 %v44, %v81
  %v99 = vmul.f32 %v44, %v85
  %v100 = vmul.f32 %v44, %v89
  %v101 = vmul.f32 %v44, %v93
  %v102 = vmul.f32 %v49, %v81
  %v103 = vmul.f32 %v49, %v85
  %v104 = vmul.f32 %v49, %v89
  %v105 = vmul.f32 %v49, %v93
  %v106 = vmul.f32 %v54, %v81
  %v107 = vmul.f32 %v54, %v85
  %v108 = vmul.f32 %v54, %v89
  %v109 = vmul.f32 %v54, %v93
  %110 = vset.pattern.permute.xlu0 1
  %111 = vperm.xlu0 %110, %v20
  %v112 = vpop.permute.xlu0 %111
  %114 = vset.pattern.permute.xlu0 1
  %115 = vperm.xlu0 %114, %v21
  %v116 = vpop.permute.xlu0 %115
  %118 = vset.pattern.permute.xlu0 1
  %119 = vperm.xlu0 %118, %v22
  %v120 = vpop.permute.xlu0 %119
  %122 = vset.pattern.permute.xlu0 1
  %123 = vperm.xlu0 %122, %v23
  %v124 = vpop.permute.xlu0 %123
  %v126 = vlaneseq
  %v127 = vshrl.u32 %v126, 7
  %v128 = vsub.s32 1, %v127
  %v129 = vrot.slane %v34, %v128
  %v130 = vlaneseq
  %v131 = vshrl.u32 %v130, 7
  %v132 = vsub.s32 5, %v131
  %v133 = vrot.slane %v34, %v132
  %v134 = vlaneseq
  %v135 = vshrl.u32 %v134, 7
  %v136 = vsub.s32 1, %v135
  %v137 = vrot.slane %v35, %v136
  %v138 = vlaneseq
  %v139 = vshrl.u32 %v138, 7
  %v140 = vsub.s32 5, %v139
  %v141 = vrot.slane %v35, %v140
  %v146 = vlaneseq
  %v147 = vshrl.u32 %v146, 7
  %v148 = vsub.s32 1, %v147
  %v149 = vrot.slane %v129, %v148
  %v150 = vlaneseq
  %v151 = vshrl.u32 %v150, 7
  %v152 = vsub.s32 1, %v151
  %v153 = vrot.slane %v133, %v152
  %v154 = vlaneseq
  %v155 = vshrl.u32 %v154, 7
  %v156 = vsub.s32 1, %v155
  %v157 = vrot.slane %v137, %v156
  %v158 = vlaneseq
  %v159 = vshrl.u32 %v158, 7
  %v160 = vsub.s32 1, %v159
  %v161 = vrot.slane %v141, %v160
  %v162 = vmul.f32 %v112, %v149
  %v163 = vmul.f32 %v112, %v153
  %v164 = vmul.f32 %v112, %v157
  %v165 = vmul.f32 %v112, %v161
  %v166 = vmul.f32 %v116, %v149
  %v167 = vmul.f32 %v116, %v153
  %v168 = vmul.f32 %v116, %v157
  %v169 = vmul.f32 %v116, %v161
  %v170 = vmul.f32 %v120, %v149
  %v171 = vmul.f32 %v120, %v153
  %v172 = vmul.f32 %v120, %v157
  %v173 = vmul.f32 %v120, %v161
  %v174 = vmul.f32 %v124, %v149
  %v175 = vmul.f32 %v124, %v153
  %v176 = vmul.f32 %v124, %v157
  %v177 = vmul.f32 %v124, %v161
  %v178 = vadd.f32 %v94, %v162
  %v179 = vadd.f32 %v95, %v163
  %v180 = vadd.f32 %v96, %v164
  %v181 = vadd.f32 %v97, %v165
  %v182 = vadd.f32 %v98, %v166
  %v183 = vadd.f32 %v99, %v167
  %v184 = vadd.f32 %v100, %v168
  %v185 = vadd.f32 %v101, %v169
  %v186 = vadd.f32 %v102, %v170
  %v187 = vadd.f32 %v103, %v171
  %v188 = vadd.f32 %v104, %v172
  %v189 = vadd.f32 %v105, %v173
  %v190 = vadd.f32 %v106, %v174
  %v191 = vadd.f32 %v107, %v175
  %v192 = vadd.f32 %v108, %v176
  %v193 = vadd.f32 %v109, %v177
  %194 = vset.pattern.permute.xlu0 2
  %195 = vperm.xlu0 %194, %v20
  %v196 = vpop.permute.xlu0 %195
  %198 = vset.pattern.permute.xlu0 2
  %199 = vperm.xlu0 %198, %v21
  %v200 = vpop.permute.xlu0 %199
  %202 = vset.pattern.permute.xlu0 2
  %203 = vperm.xlu0 %202, %v22
  %v204 = vpop.permute.xlu0 %203
  %206 = vset.pattern.permute.xlu0 2
  %207 = vperm.xlu0 %206, %v23
  %v208 = vpop.permute.xlu0 %207
  %v210 = vlaneseq
  %v211 = vshrl.u32 %v210, 7
  %v212 = vsub.s32 2, %v211
  %v213 = vrot.slane %v34, %v212
  %v214 = vlaneseq
  %v215 = vshrl.u32 %v214, 7
  %v216 = vsub.s32 6, %v215
  %v217 = vrot.slane %v34, %v216
  %v218 = vlaneseq
  %v219 = vshrl.u32 %v218, 7
  %v220 = vsub.s32 2, %v219
  %v221 = vrot.slane %v35, %v220
  %v222 = vlaneseq
  %v223 = vshrl.u32 %v222, 7
  %v224 = vsub.s32 6, %v223
  %v225 = vrot.slane %v35, %v224
  %v230 = vlaneseq
  %v231 = vshrl.u32 %v230, 7
  %v232 = vsub.s32 2, %v231
  %v233 = vrot.slane %v213, %v232
  %v234 = vlaneseq
  %v235 = vshrl.u32 %v234, 7
  %v236 = vsub.s32 2, %v235
  %v237 = vrot.slane %v217, %v236
  %v238 = vlaneseq
  %v239 = vshrl.u32 %v238, 7
  %v240 = vsub.s32 2, %v239
  %v241 = vrot.slane %v221, %v240
  %v242 = vlaneseq
  %v243 = vshrl.u32 %v242, 7
  %v244 = vsub.s32 2, %v243
  %v245 = vrot.slane %v225, %v244
  %v246 = vmul.f32 %v196, %v233
  %v247 = vmul.f32 %v196, %v237
  %v248 = vmul.f32 %v196, %v241
  %v249 = vmul.f32 %v196, %v245
  %v250 = vmul.f32 %v200, %v233
  %v251 = vmul.f32 %v200, %v237
  %v252 = vmul.f32 %v200, %v241
  %v253 = vmul.f32 %v200, %v245
  %v254 = vmul.f32 %v204, %v233
  %v255 = vmul.f32 %v204, %v237
  %v256 = vmul.f32 %v204, %v241
  %v257 = vmul.f32 %v204, %v245
  %v258 = vmul.f32 %v208, %v233
  %v259 = vmul.f32 %v208, %v237
  %v260 = vmul.f32 %v208, %v241
  %v261 = vmul.f32 %v208, %v245
  %v262 = vadd.f32 %v178, %v246
  %v263 = vadd.f32 %v179, %v247
  %v264 = vadd.f32 %v180, %v248
  %v265 = vadd.f32 %v181, %v249
  %v266 = vadd.f32 %v182, %v250
  %v267 = vadd.f32 %v183, %v251
  %v268 = vadd.f32 %v184, %v252
  %v269 = vadd.f32 %v185, %v253
  %v270 = vadd.f32 %v186, %v254
  %v271 = vadd.f32 %v187, %v255
  %v272 = vadd.f32 %v188, %v256
  %v273 = vadd.f32 %v189, %v257
  %v274 = vadd.f32 %v190, %v258
  %v275 = vadd.f32 %v191, %v259
  %v276 = vadd.f32 %v192, %v260
  %v277 = vadd.f32 %v193, %v261
  %279 = vset.pattern.permute.xlu0 0
  %280 = vperm.xlu0 %279, %v24
  %v281 = vpop.permute.xlu0 %280
  %284 = vset.pattern.permute.xlu0 0
  %285 = vperm.xlu0 %284, %v25
  %v286 = vpop.permute.xlu0 %285
  %289 = vset.pattern.permute.xlu0 0
  %290 = vperm.xlu0 %289, %v26
  %v291 = vpop.permute.xlu0 %290
  %294 = vset.pattern.permute.xlu0 0
  %295 = vperm.xlu0 %294, %v27
  %v296 = vpop.permute.xlu0 %295
  %v298 = vadd.f32 %v262, %v281
  %v299 = vadd.f32 %v263, %v281
  %v300 = vadd.f32 %v264, %v281
  %v301 = vadd.f32 %v265, %v281
  %v302 = vadd.f32 %v266, %v286
  %v303 = vadd.f32 %v267, %v286
  %v304 = vadd.f32 %v268, %v286
  %v305 = vadd.f32 %v269, %v286
  %v306 = vadd.f32 %v270, %v291
  %v307 = vadd.f32 %v271, %v291
  %v308 = vadd.f32 %v272, %v291
  %v309 = vadd.f32 %v273, %v291
  %v310 = vadd.f32 %v274, %v296
  %v311 = vadd.f32 %v275, %v296
  %v312 = vadd.f32 %v276, %v296
  %v313 = vadd.f32 %v277, %v296
  %v314 = vmul.f32 %v298, %v298
  %v315 = vmul.f32 %v299, %v299
  %v316 = vmul.f32 %v300, %v300
  %v317 = vmul.f32 %v301, %v301
  %v318 = vmul.f32 %v302, %v302
  %v319 = vmul.f32 %v303, %v303
  %v320 = vmul.f32 %v304, %v304
  %v321 = vmul.f32 %v305, %v305
  %v322 = vmul.f32 %v306, %v306
  %v323 = vmul.f32 %v307, %v307
  %v324 = vmul.f32 %v308, %v308
  %v325 = vmul.f32 %v309, %v309
  %v326 = vmul.f32 %v310, %v310
  %v327 = vmul.f32 %v311, %v311
  %v328 = vmul.f32 %v312, %v312
  %v329 = vmul.f32 %v313, %v313
  %v330 = vmul.f32 %v298, %v314
  %v331 = vmul.f32 %v299, %v315
  %v332 = vmul.f32 %v300, %v316
  %v333 = vmul.f32 %v301, %v317
  %v334 = vmul.f32 %v302, %v318
  %v335 = vmul.f32 %v303, %v319
  %v336 = vmul.f32 %v304, %v320
  %v337 = vmul.f32 %v305, %v321
  %v338 = vmul.f32 %v306, %v322
  %v339 = vmul.f32 %v307, %v323
  %v340 = vmul.f32 %v308, %v324
  %v341 = vmul.f32 %v309, %v325
  %v342 = vmul.f32 %v310, %v326
  %v343 = vmul.f32 %v311, %v327
  %v344 = vmul.f32 %v312, %v328
  %v345 = vmul.f32 %v313, %v329
  %v346 = vmul.f32 %v330, 0.044715
  %v347 = vmul.f32 %v331, 0.044715
  %v348 = vmul.f32 %v332, 0.044715
  %v349 = vmul.f32 %v333, 0.044715
  %v350 = vmul.f32 %v334, 0.044715
  %v351 = vmul.f32 %v335, 0.044715
  %v352 = vmul.f32 %v336, 0.044715
  %v353 = vmul.f32 %v337, 0.044715
  %v354 = vmul.f32 %v338, 0.044715
  %v355 = vmul.f32 %v339, 0.044715
  %v356 = vmul.f32 %v340, 0.044715
  %v357 = vmul.f32 %v341, 0.044715
  %v358 = vmul.f32 %v342, 0.044715
  %v359 = vmul.f32 %v343, 0.044715
  %v360 = vmul.f32 %v344, 0.044715
  %v361 = vmul.f32 %v345, 0.044715
  %v362 = vadd.f32 %v298, %v346
  %v363 = vadd.f32 %v299, %v347
  %v364 = vadd.f32 %v300, %v348
  %v365 = vadd.f32 %v301, %v349
  %v366 = vadd.f32 %v302, %v350
  %v367 = vadd.f32 %v303, %v351
  %v368 = vadd.f32 %v304, %v352
  %v369 = vadd.f32 %v305, %v353
  %v370 = vadd.f32 %v306, %v354
  %v371 = vadd.f32 %v307, %v355
  %v372 = vadd.f32 %v308, %v356
  %v373 = vadd.f32 %v309, %v357
  %v374 = vadd.f32 %v310, %v358
  %v375 = vadd.f32 %v311, %v359
  %v376 = vadd.f32 %v312, %v360
  %v377 = vadd.f32 %v313, %v361
  %v378 = vmul.f32 %v362, 0.7978846
  %v379 = vmul.f32 %v363, 0.7978846
  %v380 = vmul.f32 %v364, 0.7978846
  %v381 = vmul.f32 %v365, 0.7978846
  %v382 = vmul.f32 %v366, 0.7978846
  %v383 = vmul.f32 %v367, 0.7978846
  %v384 = vmul.f32 %v368, 0.7978846
  %v385 = vmul.f32 %v369, 0.7978846
  %v386 = vmul.f32 %v370, 0.7978846
  %v387 = vmul.f32 %v371, 0.7978846
  %v388 = vmul.f32 %v372, 0.7978846
  %v389 = vmul.f32 %v373, 0.7978846
  %v390 = vmul.f32 %v374, 0.7978846
  %v391 = vmul.f32 %v375, 0.7978846
  %v392 = vmul.f32 %v376, 0.7978846
  %v393 = vmul.f32 %v377, 0.7978846
  %v394 = vtanh.pop %v378
  %v395 = vtanh.pop %v379
  %v396 = vtanh.pop %v380
  %v397 = vtanh.pop %v381
  %v398 = vtanh.pop %v382
  %v399 = vtanh.pop %v383
  %v400 = vtanh.pop %v384
  %v401 = vtanh.pop %v385
  %v402 = vtanh.pop %v386
  %v403 = vtanh.pop %v387
  %v404 = vtanh.pop %v388
  %v405 = vtanh.pop %v389
  %v406 = vtanh.pop %v390
  %v407 = vtanh.pop %v391
  %v408 = vtanh.pop %v392
  %v409 = vtanh.pop %v393
  %v410 = vadd.f32 %v394, 1.0
  %v411 = vadd.f32 %v395, 1.0
  %v412 = vadd.f32 %v396, 1.0
  %v413 = vadd.f32 %v397, 1.0
  %v414 = vadd.f32 %v398, 1.0
  %v415 = vadd.f32 %v399, 1.0
  %v416 = vadd.f32 %v400, 1.0
  %v417 = vadd.f32 %v401, 1.0
  %v418 = vadd.f32 %v402, 1.0
  %v419 = vadd.f32 %v403, 1.0
  %v420 = vadd.f32 %v404, 1.0
  %v421 = vadd.f32 %v405, 1.0
  %v422 = vadd.f32 %v406, 1.0
  %v423 = vadd.f32 %v407, 1.0
  %v424 = vadd.f32 %v408, 1.0
  %v425 = vadd.f32 %v409, 1.0
  %v426 = vmul.f32 %v410, 0.5
  %v427 = vmul.f32 %v411, 0.5
  %v428 = vmul.f32 %v412, 0.5
  %v429 = vmul.f32 %v413, 0.5
  %v430 = vmul.f32 %v414, 0.5
  %v431 = vmul.f32 %v415, 0.5
  %v432 = vmul.f32 %v416, 0.5
  %v433 = vmul.f32 %v417, 0.5
  %v434 = vmul.f32 %v418, 0.5
  %v435 = vmul.f32 %v419, 0.5
  %v436 = vmul.f32 %v420, 0.5
  %v437 = vmul.f32 %v421, 0.5
  %v438 = vmul.f32 %v422, 0.5
  %v439 = vmul.f32 %v423, 0.5
  %v440 = vmul.f32 %v424, 0.5
  %v441 = vmul.f32 %v425, 0.5
  %v442 = vmul.f32 %v298, %v426
  %v443 = vmul.f32 %v299, %v427
  %v444 = vmul.f32 %v300, %v428
  %v445 = vmul.f32 %v301, %v429
  %v446 = vmul.f32 %v302, %v430
  %v447 = vmul.f32 %v303, %v431
  %v448 = vmul.f32 %v304, %v432
  %v449 = vmul.f32 %v305, %v433
  %v450 = vmul.f32 %v306, %v434
  %v451 = vmul.f32 %v307, %v435
  %v452 = vmul.f32 %v308, %v436
  %v453 = vmul.f32 %v309, %v437
  %v454 = vmul.f32 %v310, %v438
  %v455 = vmul.f32 %v311, %v439
  %v456 = vmul.f32 %v312, %v440
  %v457 = vmul.f32 %v313, %v441
  %v459 = vlaneseq
  %v460 = vshrl.u32 %v459, 7
  %v461 = vsub.s32 0, %v460
  %v462 = vrot.slane %v32, %v461
  %464 = vxpose.xlu0.b32.start [1/16] %v442, 128
  %465 = vxpose.xlu0.b32.cont [2/16] %v446, 128
  %466 = vxpose.xlu0.b32.cont [3/16] %v450, 128
  %467 = vxpose.xlu0.b32.cont [4/16] %v454, 128
  %468 = vxpose.xlu0.b32.cont [5/16] 0.0, 128
  %469 = vxpose.xlu0.b32.cont [6/16] 0.0, 128
  %470 = vxpose.xlu0.b32.cont [7/16] 0.0, 128
  %471 = vxpose.xlu0.b32.cont [8/16] 0.0, 128
  %472 = vxpose.xlu0.b32.cont [9/16] 0.0, 128
  %473 = vxpose.xlu0.b32.cont [10/16] 0.0, 128
  %474 = vxpose.xlu0.b32.cont [11/16] 0.0, 128
  %475 = vxpose.xlu0.b32.cont [12/16] 0.0, 128
  %476 = vxpose.xlu0.b32.cont [13/16] 0.0, 128
  %477 = vxpose.xlu0.b32.cont [14/16] 0.0, 128
  %478 = vxpose.xlu0.b32.cont [15/16] 0.0, 128
  %479 = vxpose.xlu0.b32.end [16/16] 0.0, 128
  %v480 = vpop.trf.xlu0
  %v481 = vpop.trf.xlu0
  %v482 = vpop.trf.xlu0
  %v483 = vpop.trf.xlu0
  %v484 = vpop.trf.xlu0
  %v485 = vpop.trf.xlu0
  %v486 = vpop.trf.xlu0
  %v487 = vpop.trf.xlu0
  %v488 = vpop.trf.xlu0
  %v489 = vpop.trf.xlu0
  %v490 = vpop.trf.xlu0
  %v491 = vpop.trf.xlu0
  %v492 = vpop.trf.xlu0
  %v493 = vpop.trf.xlu0
  %v494 = vpop.trf.xlu0
  %v495 = vpop.trf.xlu0
  %496 = vxpose.xlu0.b32.start [1/16] %v443, 128
  %497 = vxpose.xlu0.b32.cont [2/16] %v447, 128
  %498 = vxpose.xlu0.b32.cont [3/16] %v451, 128
  %499 = vxpose.xlu0.b32.cont [4/16] %v455, 128
  %500 = vxpose.xlu0.b32.cont [5/16] 0.0, 128
  %501 = vxpose.xlu0.b32.cont [6/16] 0.0, 128
  %502 = vxpose.xlu0.b32.cont [7/16] 0.0, 128
  %503 = vxpose.xlu0.b32.cont [8/16] 0.0, 128
  %504 = vxpose.xlu0.b32.cont [9/16] 0.0, 128
  %505 = vxpose.xlu0.b32.cont [10/16] 0.0, 128
  %506 = vxpose.xlu0.b32.cont [11/16] 0.0, 128
  %507 = vxpose.xlu0.b32.cont [12/16] 0.0, 128
  %508 = vxpose.xlu0.b32.cont [13/16] 0.0, 128
  %509 = vxpose.xlu0.b32.cont [14/16] 0.0, 128
  %510 = vxpose.xlu0.b32.cont [15/16] 0.0, 128
  %511 = vxpose.xlu0.b32.end [16/16] 0.0, 128
  %v512 = vpop.trf.xlu0
  %v513 = vpop.trf.xlu0
  %v514 = vpop.trf.xlu0
  %v515 = vpop.trf.xlu0
  %v516 = vpop.trf.xlu0
  %v517 = vpop.trf.xlu0
  %v518 = vpop.trf.xlu0
  %v519 = vpop.trf.xlu0
  %v520 = vpop.trf.xlu0
  %v521 = vpop.trf.xlu0
  %v522 = vpop.trf.xlu0
  %v523 = vpop.trf.xlu0
  %v524 = vpop.trf.xlu0
  %v525 = vpop.trf.xlu0
  %v526 = vpop.trf.xlu0
  %v527 = vpop.trf.xlu0
  %528 = vxpose.xlu0.b32.start [1/16] %v444, 128
  %529 = vxpose.xlu0.b32.cont [2/16] %v448, 128
  %530 = vxpose.xlu0.b32.cont [3/16] %v452, 128
  %531 = vxpose.xlu0.b32.cont [4/16] %v456, 128
  %532 = vxpose.xlu0.b32.cont [5/16] 0.0, 128
  %533 = vxpose.xlu0.b32.cont [6/16] 0.0, 128
  %534 = vxpose.xlu0.b32.cont [7/16] 0.0, 128
  %535 = vxpose.xlu0.b32.cont [8/16] 0.0, 128
  %536 = vxpose.xlu0.b32.cont [9/16] 0.0, 128
  %537 = vxpose.xlu0.b32.cont [10/16] 0.0, 128
  %538 = vxpose.xlu0.b32.cont [11/16] 0.0, 128
  %539 = vxpose.xlu0.b32.cont [12/16] 0.0, 128
  %540 = vxpose.xlu0.b32.cont [13/16] 0.0, 128
  %541 = vxpose.xlu0.b32.cont [14/16] 0.0, 128
  %542 = vxpose.xlu0.b32.cont [15/16] 0.0, 128
  %543 = vxpose.xlu0.b32.end [16/16] 0.0, 128
  %v544 = vpop.trf.xlu0
  %v545 = vpop.trf.xlu0
  %v546 = vpop.trf.xlu0
  %v547 = vpop.trf.xlu0
  %v548 = vpop.trf.xlu0
  %v549 = vpop.trf.xlu0
  %v550 = vpop.trf.xlu0
  %v551 = vpop.trf.xlu0
  %v552 = vpop.trf.xlu0
  %v553 = vpop.trf.xlu0
  %v554 = vpop.trf.xlu0
  %v555 = vpop.trf.xlu0
  %v556 = vpop.trf.xlu0
  %v557 = vpop.trf.xlu0
  %v558 = vpop.trf.xlu0
  %v559 = vpop.trf.xlu0
  %560 = vxpose.xlu0.b32.start [1/16] %v445, 128
  %561 = vxpose.xlu0.b32.cont [2/16] %v449, 128
  %562 = vxpose.xlu0.b32.cont [3/16] %v453, 128
  %563 = vxpose.xlu0.b32.cont [4/16] %v457, 128
  %564 = vxpose.xlu0.b32.cont [5/16] 0.0, 128
  %565 = vxpose.xlu0.b32.cont [6/16] 0.0, 128
  %566 = vxpose.xlu0.b32.cont [7/16] 0.0, 128
  %567 = vxpose.xlu0.b32.cont [8/16] 0.0, 128
  %568 = vxpose.xlu0.b32.cont [9/16] 0.0, 128
  %569 = vxpose.xlu0.b32.cont [10/16] 0.0, 128
  %570 = vxpose.xlu0.b32.cont [11/16] 0.0, 128
  %571 = vxpose.xlu0.b32.cont [12/16] 0.0, 128
  %572 = vxpose.xlu0.b32.cont [13/16] 0.0, 128
  %573 = vxpose.xlu0.b32.cont [14/16] 0.0, 128
  %574 = vxpose.xlu0.b32.cont [15/16] 0.0, 128
  %575 = vxpose.xlu0.b32.end [16/16] 0.0, 128
  %v576 = vpop.trf.xlu0
  %v577 = vpop.trf.xlu0
  %v578 = vpop.trf.xlu0
  %v579 = vpop.trf.xlu0
  %v580 = vpop.trf.xlu0
  %v581 = vpop.trf.xlu0
  %v582 = vpop.trf.xlu0
  %v583 = vpop.trf.xlu0
  %v584 = vpop.trf.xlu0
  %v585 = vpop.trf.xlu0
  %v586 = vpop.trf.xlu0
  %v587 = vpop.trf.xlu0
  %v588 = vpop.trf.xlu0
  %v589 = vpop.trf.xlu0
  %v590 = vpop.trf.xlu0
  %v591 = vpop.trf.xlu0
  %vm592 = vcmask 261120
  %v594 = vsel %vm592, %v480, 0
  %v597 = vsel %vm592, %v481, 0
  %v600 = vsel %vm592, %v482, 0
  %v603 = vsel %vm592, %v483, 0
  %v606 = vsel %vm592, %v484, 0
  %v609 = vsel %vm592, %v485, 0
  %v612 = vsel %vm592, %v486, 0
  %v615 = vsel %vm592, %v487, 0
  %v618 = vsel %vm592, %v488, 0
  %v621 = vsel %vm592, %v489, 0
  %v624 = vsel %vm592, %v490, 0
  %v627 = vsel %vm592, %v491, 0
  %v630 = vsel %vm592, %v492, 0
  %v633 = vsel %vm592, %v493, 0
  %v636 = vsel %vm592, %v494, 0
  %v639 = vsel %vm592, %v495, 0
  %v642 = vsel %vm592, %v512, 0
  %v645 = vsel %vm592, %v513, 0
  %v648 = vsel %vm592, %v514, 0
  %v651 = vsel %vm592, %v515, 0
  %v654 = vsel %vm592, %v516, 0
  %v657 = vsel %vm592, %v517, 0
  %v660 = vsel %vm592, %v518, 0
  %v663 = vsel %vm592, %v519, 0
  %v666 = vsel %vm592, %v520, 0
  %v669 = vsel %vm592, %v521, 0
  %v672 = vsel %vm592, %v522, 0
  %v675 = vsel %vm592, %v523, 0
  %v678 = vsel %vm592, %v524, 0
  %v681 = vsel %vm592, %v525, 0
  %v684 = vsel %vm592, %v526, 0
  %v687 = vsel %vm592, %v527, 0
  %v690 = vsel %vm592, %v544, 0
  %v693 = vsel %vm592, %v545, 0
  %v696 = vsel %vm592, %v546, 0
  %v699 = vsel %vm592, %v547, 0
  %v702 = vsel %vm592, %v548, 0
  %v705 = vsel %vm592, %v549, 0
  %v708 = vsel %vm592, %v550, 0
  %v711 = vsel %vm592, %v551, 0
  %v714 = vsel %vm592, %v552, 0
  %v717 = vsel %vm592, %v553, 0
  %v720 = vsel %vm592, %v554, 0
  %v723 = vsel %vm592, %v555, 0
  %v726 = vsel %vm592, %v556, 0
  %v729 = vsel %vm592, %v557, 0
  %v732 = vsel %vm592, %v558, 0
  %v735 = vsel %vm592, %v559, 0
  %v738 = vsel %vm592, %v576, 0
  %v741 = vsel %vm592, %v577, 0
  %v744 = vsel %vm592, %v578, 0
  %v747 = vsel %vm592, %v579, 0
  %v750 = vsel %vm592, %v580, 0
  %v753 = vsel %vm592, %v581, 0
  %v756 = vsel %vm592, %v582, 0
  %v759 = vsel %vm592, %v583, 0
  %v762 = vsel %vm592, %v584, 0
  %v765 = vsel %vm592, %v585, 0
  %v768 = vsel %vm592, %v586, 0
  %v771 = vsel %vm592, %v587, 0
  %v774 = vsel %vm592, %v588, 0
  %v777 = vsel %vm592, %v589, 0
  %v780 = vsel %vm592, %v590, 0
  %v783 = vsel %vm592, %v591, 0
  %785 = vmatprep.subr.mxu0 0.0
  %786 = vmatpush1.msra.mxu0 %v28
  %787 = vmatprep.subr.mxu0 0.0
  %788 = vmatpush1.msra.mxu0 %v29
  %789 = vmatprep.subr.mxu0 0.0
  %790 = vmatpush1.msra.mxu0 %v30
  %791 = vmatprep.subr.mxu0 0.0
  %792 = vmatpush1.msra.mxu0 %v31
  %793 = vmatprep.subr.mxu0 0.0
  %794 = vmatpush1.msra.mxu0 0.0
  %795 = vmatprep.subr.mxu0 0.0
  %796 = vmatpush1.msra.mxu0 0.0
  %797 = vmatprep.subr.mxu0 0.0
  %798 = vmatpush1.msra.mxu0 0.0
  %799 = vmatprep.subr.mxu0 0.0
  %800 = vmatpush1.msra.mxu0 0.0
  %801 = vmatprep.subr.mxu0 0.0
  %802 = vmatpush1.msra.mxu0 0.0
  %803 = vmatprep.subr.mxu0 0.0
  %804 = vmatpush1.msra.mxu0 0.0
  %805 = vmatprep.subr.mxu0 0.0
  %806 = vmatpush1.msra.mxu0 0.0
  %807 = vmatprep.subr.mxu0 0.0
  %808 = vmatpush1.msra.mxu0 0.0
  %809 = vmatprep.subr.mxu0 0.0
  %810 = vmatpush1.msra.mxu0 0.0
  %811 = vmatprep.subr.mxu0 0.0
  %812 = vmatpush1.msra.mxu0 0.0
  %813 = vmatprep.subr.mxu0 0.0
  %814 = vmatpush1.msra.mxu0 0.0
  %815 = vmatprep.subr.mxu0 0.0
  %816 = vmatpush1.msra.mxu0 0.0
  %817 = vmatprep.subr.mxu0 0.0
  %818 = vmatpush1.msra.mxu0 0.0
  %819 = vmatprep.subr.mxu0 0.0
  %820 = vmatpush1.msra.mxu0 0.0
  %821 = vmatprep.subr.mxu0 0.0
  %822 = vmatpush1.msra.mxu0 0.0
  %823 = vmatprep.subr.mxu0 0.0
  %824 = vmatpush1.msra.mxu0 0.0
  %825 = vmatprep.subr.mxu0 0.0
  %826 = vmatpush1.msra.mxu0 0.0
  %827 = vmatprep.subr.mxu0 0.0
  %828 = vmatpush1.msra.mxu0 0.0
  %829 = vmatprep.subr.mxu0 0.0
  %830 = vmatpush1.msra.mxu0 0.0
  %831 = vmatprep.subr.mxu0 0.0
  %832 = vmatpush1.msra.mxu0 0.0
  %833 = vmatprep.subr.mxu0 0.0
  %834 = vmatpush1.msra.mxu0 0.0
  %835 = vmatprep.subr.mxu0 0.0
  %836 = vmatpush1.msra.mxu0 0.0
  %837 = vmatprep.subr.mxu0 0.0
  %838 = vmatpush1.msra.mxu0 0.0
  %839 = vmatprep.subr.mxu0 0.0
  %840 = vmatpush1.msra.mxu0 0.0
  %841 = vmatprep.subr.mxu0 0.0
  %842 = vmatpush1.msra.mxu0 0.0
  %843 = vmatprep.subr.mxu0 0.0
  %844 = vmatpush1.msra.mxu0 0.0
  %845 = vmatprep.subr.mxu0 0.0
  %846 = vmatpush1.msra.mxu0 0.0
  %847 = vmatprep.subr.mxu0 0.0
  %848 = vmatpush1.msra.mxu0 0.0
  %849 = vmatprep.mubr.f32.mxu0 0.0
  %850 = vmatmul.mubr.f32.gmra.mrb[0].mxu0 %v594
  %v851 = vpop.f32.mrb[0].mxu0
  %v852 = vadd.f32 %v462, %v851
  %v853 = vpop.f32.mrb[0].mxu0
  %854 = vmatprep.mubr.f32.mxu0 0.0
  %855 = vmatmul.mubr.f32.gmra.mrb[0].mxu0 %v597
  %v856 = vpop.f32.mrb[0].mxu0
  %v857 = vadd.f32 %v462, %v856
  %v858 = vpop.f32.mrb[0].mxu0
  %859 = vmatprep.mubr.f32.mxu0 0.0
  %860 = vmatmul.mubr.f32.gmra.mrb[0].mxu0 %v600
  %v861 = vpop.f32.mrb[0].mxu0
  %v862 = vadd.f32 %v462, %v861
  %v863 = vpop.f32.mrb[0].mxu0
  %864 = vmatprep.mubr.f32.mxu0 0.0
  %865 = vmatmul.mubr.f32.gmra.mrb[0].mxu0 %v603
  %v866 = vpop.f32.mrb[0].mxu0
  %v867 = vadd.f32 %v462, %v866
  %v868 = vpop.f32.mrb[0].mxu0
  %869 = vmatprep.mubr.f32.mxu0 0.0
  %870 = vmatmul.mubr.f32.gmra.mrb[0].mxu0 %v606
  %v871 = vpop.f32.mrb[0].mxu0
  %v872 = vadd.f32 %v462, %v871
  %v873 = vpop.f32.mrb[0].mxu0
  %874 = vmatprep.mubr.f32.mxu0 0.0
  %875 = vmatmul.mubr.f32.gmra.mrb[0].mxu0 %v609
  %v876 = vpop.f32.mrb[0].mxu0
  %v877 = vadd.f32 %v462, %v876
  %v878 = vpop.f32.mrb[0].mxu0
  %879 = vmatprep.mubr.f32.mxu0 0.0
  %880 = vmatmul.mubr.f32.gmra.mrb[0].mxu0 %v612
  %v881 = vpop.f32.mrb[0].mxu0
  %v882 = vadd.f32 %v462, %v881
  %v883 = vpop.f32.mrb[0].mxu0
  %884 = vmatprep.mubr.f32.mxu0 0.0
  %885 = vmatmul.mubr.f32.gmra.mrb[0].mxu0 %v615
  %v886 = vpop.f32.mrb[0].mxu0
  %v887 = vadd.f32 %v462, %v886
  %v888 = vpop.f32.mrb[0].mxu0
  %889 = vmatprep.mubr.f32.mxu0 0.0
  %890 = vmatmul.mubr.f32.gmra.mrb[0].mxu0 %v618
  %v891 = vpop.f32.mrb[0].mxu0
  %v892 = vadd.f32 %v462, %v891
  %v893 = vpop.f32.mrb[0].mxu0
  %894 = vmatprep.mubr.f32.mxu0 0.0
  %895 = vmatmul.mubr.f32.gmra.mrb[0].mxu0 %v621
  %v896 = vpop.f32.mrb[0].mxu0
  %v897 = vadd.f32 %v462, %v896
  %v898 = vpop.f32.mrb[0].mxu0
  %899 = vmatprep.mubr.f32.mxu0 0.0
  %900 = vmatmul.mubr.f32.gmra.mrb[0].mxu0 %v624
  %v901 = vpop.f32.mrb[0].mxu0
  %v902 = vadd.f32 %v462, %v901
  %v903 = vpop.f32.mrb[0].mxu0
  %904 = vmatprep.mubr.f32.mxu0 0.0
  %905 = vmatmul.mubr.f32.gmra.mrb[0].mxu0 %v627
  %v906 = vpop.f32.mrb[0].mxu0
  %v907 = vadd.f32 %v462, %v906
  %v908 = vpop.f32.mrb[0].mxu0
  %909 = vmatprep.mubr.f32.mxu0 0.0
  %910 = vmatmul.mubr.f32.gmra.mrb[0].mxu0 %v630
  %v911 = vpop.f32.mrb[0].mxu0
  %v912 = vadd.f32 %v462, %v911
  %v913 = vpop.f32.mrb[0].mxu0
  %914 = vmatprep.mubr.f32.mxu0 0.0
  %915 = vmatmul.mubr.f32.gmra.mrb[0].mxu0 %v633
  %v916 = vpop.f32.mrb[0].mxu0
  %v917 = vadd.f32 %v462, %v916
  %v918 = vpop.f32.mrb[0].mxu0
  %919 = vmatprep.mubr.f32.mxu0 0.0
  %920 = vmatmul.mubr.f32.gmra.mrb[0].mxu0 %v636
  %v921 = vpop.f32.mrb[0].mxu0
  %v922 = vadd.f32 %v462, %v921
  %v923 = vpop.f32.mrb[0].mxu0
  %924 = vmatprep.mubr.f32.mxu0 0.0
  %925 = vmatmul.mubr.f32.gmra.mrb[0].mxu0 %v639
  %v926 = vpop.f32.mrb[0].mxu0
  %v927 = vadd.f32 %v462, %v926
  %v928 = vpop.f32.mrb[0].mxu0
  %929 = vmatprep.mubr.f32.mxu0 0.0
  %930 = vmatmul.mubr.f32.gmra.mrb[0].mxu0 %v642
  %v931 = vpop.f32.mrb[0].mxu0
  %v932 = vadd.f32 %v462, %v931
  %v933 = vpop.f32.mrb[0].mxu0
  %934 = vmatprep.mubr.f32.mxu0 0.0
  %935 = vmatmul.mubr.f32.gmra.mrb[0].mxu0 %v645
  %v936 = vpop.f32.mrb[0].mxu0
  %v937 = vadd.f32 %v462, %v936
  %v938 = vpop.f32.mrb[0].mxu0
  %939 = vmatprep.mubr.f32.mxu0 0.0
  %940 = vmatmul.mubr.f32.gmra.mrb[0].mxu0 %v648
  %v941 = vpop.f32.mrb[0].mxu0
  %v942 = vadd.f32 %v462, %v941
  %v943 = vpop.f32.mrb[0].mxu0
  %944 = vmatprep.mubr.f32.mxu0 0.0
  %945 = vmatmul.mubr.f32.gmra.mrb[0].mxu0 %v651
  %v946 = vpop.f32.mrb[0].mxu0
  %v947 = vadd.f32 %v462, %v946
  %v948 = vpop.f32.mrb[0].mxu0
  %949 = vmatprep.mubr.f32.mxu0 0.0
  %950 = vmatmul.mubr.f32.gmra.mrb[0].mxu0 %v654
  %v951 = vpop.f32.mrb[0].mxu0
  %v952 = vadd.f32 %v462, %v951
  %v953 = vpop.f32.mrb[0].mxu0
  %954 = vmatprep.mubr.f32.mxu0 0.0
  %955 = vmatmul.mubr.f32.gmra.mrb[0].mxu0 %v657
  %v956 = vpop.f32.mrb[0].mxu0
  %v957 = vadd.f32 %v462, %v956
  %v958 = vpop.f32.mrb[0].mxu0
  %959 = vmatprep.mubr.f32.mxu0 0.0
  %960 = vmatmul.mubr.f32.gmra.mrb[0].mxu0 %v660
  %v961 = vpop.f32.mrb[0].mxu0
  %v962 = vadd.f32 %v462, %v961
  %v963 = vpop.f32.mrb[0].mxu0
  %964 = vmatprep.mubr.f32.mxu0 0.0
  %965 = vmatmul.mubr.f32.gmra.mrb[0].mxu0 %v663
  %v966 = vpop.f32.mrb[0].mxu0
  %v967 = vadd.f32 %v462, %v966
  %v968 = vpop.f32.mrb[0].mxu0
  %969 = vmatprep.mubr.f32.mxu0 0.0
  %970 = vmatmul.mubr.f32.gmra.mrb[0].mxu0 %v666
  %v971 = vpop.f32.mrb[0].mxu0
  %v972 = vadd.f32 %v462, %v971
  %v973 = vpop.f32.mrb[0].mxu0
  %974 = vmatprep.mubr.f32.mxu0 0.0
  %975 = vmatmul.mubr.f32.gmra.mrb[0].mxu0 %v669
  %v976 = vpop.f32.mrb[0].mxu0
  %v977 = vadd.f32 %v462, %v976
  %v978 = vpop.f32.mrb[0].mxu0
  %979 = vmatprep.mubr.f32.mxu0 0.0
  %980 = vmatmul.mubr.f32.gmra.mrb[0].mxu0 %v672
  %v981 = vpop.f32.mrb[0].mxu0
  %v982 = vadd.f32 %v462, %v981
  %v983 = vpop.f32.mrb[0].mxu0
  %984 = vmatprep.mubr.f32.mxu0 0.0
  %985 = vmatmul.mubr.f32.gmra.mrb[0].mxu0 %v675
  %v986 = vpop.f32.mrb[0].mxu0
  %v987 = vadd.f32 %v462, %v986
  %v988 = vpop.f32.mrb[0].mxu0
  %989 = vmatprep.mubr.f32.mxu0 0.0
  %990 = vmatmul.mubr.f32.gmra.mrb[0].mxu0 %v678
  %v991 = vpop.f32.mrb[0].mxu0
  %v992 = vadd.f32 %v462, %v991
  %v993 = vpop.f32.mrb[0].mxu0
  %994 = vmatprep.mubr.f32.mxu0 0.0
  %995 = vmatmul.mubr.f32.gmra.mrb[0].mxu0 %v681
  %v996 = vpop.f32.mrb[0].mxu0
  %v997 = vadd.f32 %v462, %v996
  %v998 = vpop.f32.mrb[0].mxu0
  %999 = vmatprep.mubr.f32.mxu0 0.0
  %1000 = vmatmul.mubr.f32.gmra.mrb[0].mxu0 %v684
  %v1001 = vpop.f32.mrb[0].mxu0
  %v1002 = vadd.f32 %v462, %v1001
  %v1003 = vpop.f32.mrb[0].mxu0
  %1004 = vmatprep.mubr.f32.mxu0 0.0
  %1005 = vmatmul.mubr.f32.gmra.mrb[0].mxu0 %v687
  %v1006 = vpop.f32.mrb[0].mxu0
  %v1007 = vadd.f32 %v462, %v1006
  %v1008 = vpop.f32.mrb[0].mxu0
  %1009 = vmatprep.mubr.f32.mxu0 0.0
  %1010 = vmatmul.mubr.f32.gmra.mrb[0].mxu0 %v690
  %v1011 = vpop.f32.mrb[0].mxu0
  %v1012 = vadd.f32 %v462, %v1011
  %v1013 = vpop.f32.mrb[0].mxu0
  %1014 = vmatprep.mubr.f32.mxu0 0.0
  %1015 = vmatmul.mubr.f32.gmra.mrb[0].mxu0 %v693
  %v1016 = vpop.f32.mrb[0].mxu0
  %v1017 = vadd.f32 %v462, %v1016
  %v1018 = vpop.f32.mrb[0].mxu0
  %1019 = vmatprep.mubr.f32.mxu0 0.0
  %1020 = vmatmul.mubr.f32.gmra.mrb[0].mxu0 %v696
  %v1021 = vpop.f32.mrb[0].mxu0
  %v1022 = vadd.f32 %v462, %v1021
  %v1023 = vpop.f32.mrb[0].mxu0
  %1024 = vmatprep.mubr.f32.mxu0 0.0
  %1025 = vmatmul.mubr.f32.gmra.mrb[0].mxu0 %v699
  %v1026 = vpop.f32.mrb[0].mxu0
  %v1027 = vadd.f32 %v462, %v1026
  %v1028 = vpop.f32.mrb[0].mxu0
  %1029 = vmatprep.mubr.f32.mxu0 0.0
  %1030 = vmatmul.mubr.f32.gmra.mrb[0].mxu0 %v702
  %v1031 = vpop.f32.mrb[0].mxu0
  %v1032 = vadd.f32 %v462, %v1031
  %v1033 = vpop.f32.mrb[0].mxu0
  %1034 = vmatprep.mubr.f32.mxu0 0.0
  %1035 = vmatmul.mubr.f32.gmra.mrb[0].mxu0 %v705
  %v1036 = vpop.f32.mrb[0].mxu0
  %v1037 = vadd.f32 %v462, %v1036
  %v1038 = vpop.f32.mrb[0].mxu0
  %1039 = vmatprep.mubr.f32.mxu0 0.0
  %1040 = vmatmul.mubr.f32.gmra.mrb[0].mxu0 %v708
  %v1041 = vpop.f32.mrb[0].mxu0
  %v1042 = vadd.f32 %v462, %v1041
  %v1043 = vpop.f32.mrb[0].mxu0
  %1044 = vmatprep.mubr.f32.mxu0 0.0
  %1045 = vmatmul.mubr.f32.gmra.mrb[0].mxu0 %v711
  %v1046 = vpop.f32.mrb[0].mxu0
  %v1047 = vadd.f32 %v462, %v1046
  %v1048 = vpop.f32.mrb[0].mxu0
  %1049 = vmatprep.mubr.f32.mxu0 0.0
  %1050 = vmatmul.mubr.f32.gmra.mrb[0].mxu0 %v714
  %v1051 = vpop.f32.mrb[0].mxu0
  %v1052 = vadd.f32 %v462, %v1051
  %v1053 = vpop.f32.mrb[0].mxu0
  %1054 = vmatprep.mubr.f32.mxu0 0.0
  %1055 = vmatmul.mubr.f32.gmra.mrb[0].mxu0 %v717
  %v1056 = vpop.f32.mrb[0].mxu0
  %v1057 = vadd.f32 %v462, %v1056
  %v1058 = vpop.f32.mrb[0].mxu0
  %1059 = vmatprep.mubr.f32.mxu0 0.0
  %1060 = vmatmul.mubr.f32.gmra.mrb[0].mxu0 %v720
  %v1061 = vpop.f32.mrb[0].mxu0
  %v1062 = vadd.f32 %v462, %v1061
  %v1063 = vpop.f32.mrb[0].mxu0
  %1064 = vmatprep.mubr.f32.mxu0 0.0
  %1065 = vmatmul.mubr.f32.gmra.mrb[0].mxu0 %v723
  %v1066 = vpop.f32.mrb[0].mxu0
  %v1067 = vadd.f32 %v462, %v1066
  %v1068 = vpop.f32.mrb[0].mxu0
  %1069 = vmatprep.mubr.f32.mxu0 0.0
  %1070 = vmatmul.mubr.f32.gmra.mrb[0].mxu0 %v726
  %v1071 = vpop.f32.mrb[0].mxu0
  %v1072 = vadd.f32 %v462, %v1071
  %v1073 = vpop.f32.mrb[0].mxu0
  %1074 = vmatprep.mubr.f32.mxu0 0.0
  %1075 = vmatmul.mubr.f32.gmra.mrb[0].mxu0 %v729
  %v1076 = vpop.f32.mrb[0].mxu0
  %v1077 = vadd.f32 %v462, %v1076
  %v1078 = vpop.f32.mrb[0].mxu0
  %1079 = vmatprep.mubr.f32.mxu0 0.0
  %1080 = vmatmul.mubr.f32.gmra.mrb[0].mxu0 %v732
  %v1081 = vpop.f32.mrb[0].mxu0
  %v1082 = vadd.f32 %v462, %v1081
  %v1083 = vpop.f32.mrb[0].mxu0
  %1084 = vmatprep.mubr.f32.mxu0 0.0
  %1085 = vmatmul.mubr.f32.gmra.mrb[0].mxu0 %v735
  %v1086 = vpop.f32.mrb[0].mxu0
  %v1087 = vadd.f32 %v462, %v1086
  %v1088 = vpop.f32.mrb[0].mxu0
  %1089 = vmatprep.mubr.f32.mxu0 0.0
  %1090 = vmatmul.mubr.f32.gmra.mrb[0].mxu0 %v738
  %v1091 = vpop.f32.mrb[0].mxu0
  %v1092 = vadd.f32 %v462, %v1091
  %v1093 = vpop.f32.mrb[0].mxu0
  %1094 = vmatprep.mubr.f32.mxu0 0.0
  %1095 = vmatmul.mubr.f32.gmra.mrb[0].mxu0 %v741
  %v1096 = vpop.f32.mrb[0].mxu0
  %v1097 = vadd.f32 %v462, %v1096
  %v1098 = vpop.f32.mrb[0].mxu0
  %1099 = vmatprep.mubr.f32.mxu0 0.0
  %1100 = vmatmul.mubr.f32.gmra.mrb[0].mxu0 %v744
  %v1101 = vpop.f32.mrb[0].mxu0
  %v1102 = vadd.f32 %v462, %v1101
  %v1103 = vpop.f32.mrb[0].mxu0
  %1104 = vmatprep.mubr.f32.mxu0 0.0
  %1105 = vmatmul.mubr.f32.gmra.mrb[0].mxu0 %v747
  %v1106 = vpop.f32.mrb[0].mxu0
  %v1107 = vadd.f32 %v462, %v1106
  %v1108 = vpop.f32.mrb[0].mxu0
  %1109 = vmatprep.mubr.f32.mxu0 0.0
  %1110 = vmatmul.mubr.f32.gmra.mrb[0].mxu0 %v750
  %v1111 = vpop.f32.mrb[0].mxu0
  %v1112 = vadd.f32 %v462, %v1111
  %v1113 = vpop.f32.mrb[0].mxu0
  %1114 = vmatprep.mubr.f32.mxu0 0.0
  %1115 = vmatmul.mubr.f32.gmra.mrb[0].mxu0 %v753
  %v1116 = vpop.f32.mrb[0].mxu0
  %v1117 = vadd.f32 %v462, %v1116
  %v1118 = vpop.f32.mrb[0].mxu0
  %1119 = vmatprep.mubr.f32.mxu0 0.0
  %1120 = vmatmul.mubr.f32.gmra.mrb[0].mxu0 %v756
  %v1121 = vpop.f32.mrb[0].mxu0
  %v1122 = vadd.f32 %v462, %v1121
  %v1123 = vpop.f32.mrb[0].mxu0
  %1124 = vmatprep.mubr.f32.mxu0 0.0
  %1125 = vmatmul.mubr.f32.gmra.mrb[0].mxu0 %v759
  %v1126 = vpop.f32.mrb[0].mxu0
  %v1127 = vadd.f32 %v462, %v1126
  %v1128 = vpop.f32.mrb[0].mxu0
  %1129 = vmatprep.mubr.f32.mxu0 0.0
  %1130 = vmatmul.mubr.f32.gmra.mrb[0].mxu0 %v762
  %v1131 = vpop.f32.mrb[0].mxu0
  %v1132 = vadd.f32 %v462, %v1131
  %v1133 = vpop.f32.mrb[0].mxu0
  %1134 = vmatprep.mubr.f32.mxu0 0.0
  %1135 = vmatmul.mubr.f32.gmra.mrb[0].mxu0 %v765
  %v1136 = vpop.f32.mrb[0].mxu0
  %v1137 = vadd.f32 %v462, %v1136
  %v1138 = vpop.f32.mrb[0].mxu0
  %1139 = vmatprep.mubr.f32.mxu0 0.0
  %1140 = vmatmul.mubr.f32.gmra.mrb[0].mxu0 %v768
  %v1141 = vpop.f32.mrb[0].mxu0
  %v1142 = vadd.f32 %v462, %v1141
  %v1143 = vpop.f32.mrb[0].mxu0
  %1144 = vmatprep.mubr.f32.mxu0 0.0
  %1145 = vmatmul.mubr.f32.gmra.mrb[0].mxu0 %v771
  %v1146 = vpop.f32.mrb[0].mxu0
  %v1147 = vadd.f32 %v462, %v1146
  %v1148 = vpop.f32.mrb[0].mxu0
  %1149 = vmatprep.mubr.f32.mxu0 0.0
  %1150 = vmatmul.mubr.f32.gmra.mrb[0].mxu0 %v774
  %v1151 = vpop.f32.mrb[0].mxu0
  %v1152 = vadd.f32 %v462, %v1151
  %v1153 = vpop.f32.mrb[0].mxu0
  %1154 = vmatprep.mubr.f32.mxu0 0.0
  %1155 = vmatmul.mubr.f32.gmra.mrb[0].mxu0 %v777
  %v1156 = vpop.f32.mrb[0].mxu0
  %v1157 = vadd.f32 %v462, %v1156
  %v1158 = vpop.f32.mrb[0].mxu0
  %1159 = vmatprep.mubr.f32.mxu0 0.0
  %1160 = vmatmul.mubr.f32.gmra.mrb[0].mxu0 %v780
  %v1161 = vpop.f32.mrb[0].mxu0
  %v1162 = vadd.f32 %v462, %v1161
  %v1163 = vpop.f32.mrb[0].mxu0
  %1164 = vmatprep.mubr.f32.mxu0 0.0
  %1165 = vmatmul.mubr.f32.gmra.mrb[0].mxu0 %v783
  %v1166 = vpop.f32.mrb[0].mxu0
  %v1167 = vadd.f32 %v462, %v1166
  %v1168 = vpop.f32.mrb[0].mxu0
  %1169 = vdwg.mxu0
  %v1170 = vpack.c.bf16 %v857, %v852
  %v1171 = vpack.c.bf16 %v867, %v862
  %v1172 = vpack.c.bf16 %v877, %v872
  %v1173 = vpack.c.bf16 %v887, %v882
  %v1174 = vpack.c.bf16 %v897, %v892
  %v1175 = vpack.c.bf16 %v907, %v902
  %v1176 = vpack.c.bf16 %v917, %v912
  %v1177 = vpack.c.bf16 %v927, %v922
  %v1178 = vpack.c.bf16 %v937, %v932
  %v1179 = vpack.c.bf16 %v947, %v942
  %v1180 = vpack.c.bf16 %v957, %v952
  %v1181 = vpack.c.bf16 %v967, %v962
  %v1182 = vpack.c.bf16 %v977, %v972
  %v1183 = vpack.c.bf16 %v987, %v982
  %v1184 = vpack.c.bf16 %v997, %v992
  %v1185 = vpack.c.bf16 %v1007, %v1002
  %v1186 = vpack.c.bf16 %v1017, %v1012
  %v1187 = vpack.c.bf16 %v1027, %v1022
  %v1188 = vpack.c.bf16 %v1037, %v1032
  %v1189 = vpack.c.bf16 %v1047, %v1042
  %v1190 = vpack.c.bf16 %v1057, %v1052
  %v1191 = vpack.c.bf16 %v1067, %v1062
  %v1192 = vpack.c.bf16 %v1077, %v1072
  %v1193 = vpack.c.bf16 %v1087, %v1082
  %v1194 = vpack.c.bf16 %v1097, %v1092
  %v1195 = vpack.c.bf16 %v1107, %v1102
  %v1196 = vpack.c.bf16 %v1117, %v1112
  %v1197 = vpack.c.bf16 %v1127, %v1122
  %v1198 = vpack.c.bf16 %v1137, %v1132
  %v1199 = vpack.c.bf16 %v1147, %v1142
  %v1200 = vpack.c.bf16 %v1157, %v1152
  %v1201 = vpack.c.bf16 %v1167, %v1162
  %v1234 = vunpack.c.l.b16 %v1170
  %v1235 = vunpack.c.h.b16 %v1170
  %v1236 = vunpack.c.l.b16 %v1171
  %v1237 = vunpack.c.h.b16 %v1171
  %v1238 = vunpack.c.l.b16 %v1172
  %v1239 = vunpack.c.h.b16 %v1172
  %v1240 = vunpack.c.l.b16 %v1173
  %v1241 = vunpack.c.h.b16 %v1173
  %v1242 = vunpack.c.l.b16 %v1174
  %v1243 = vunpack.c.h.b16 %v1174
  %v1244 = vunpack.c.l.b16 %v1175
  %v1245 = vunpack.c.h.b16 %v1175
  %v1246 = vunpack.c.l.b16 %v1176
  %v1247 = vunpack.c.h.b16 %v1176
  %v1248 = vunpack.c.l.b16 %v1177
  %v1249 = vunpack.c.h.b16 %v1177
  %v1250 = vunpack.c.l.b16 %v1178
  %v1251 = vunpack.c.h.b16 %v1178
  %v1252 = vunpack.c.l.b16 %v1179
  %v1253 = vunpack.c.h.b16 %v1179
  %v1254 = vunpack.c.l.b16 %v1180
  %v1255 = vunpack.c.h.b16 %v1180
  %v1256 = vunpack.c.l.b16 %v1181
  %v1257 = vunpack.c.h.b16 %v1181
  %v1258 = vunpack.c.l.b16 %v1182
  %v1259 = vunpack.c.h.b16 %v1182
  %v1260 = vunpack.c.l.b16 %v1183
  %v1261 = vunpack.c.h.b16 %v1183
  %v1262 = vunpack.c.l.b16 %v1184
  %v1263 = vunpack.c.h.b16 %v1184
  %v1264 = vunpack.c.l.b16 %v1185
  %v1265 = vunpack.c.h.b16 %v1185
  %v1266 = vunpack.c.l.b16 %v1186
  %v1267 = vunpack.c.h.b16 %v1186
  %v1268 = vunpack.c.l.b16 %v1187
  %v1269 = vunpack.c.h.b16 %v1187
  %v1270 = vunpack.c.l.b16 %v1188
  %v1271 = vunpack.c.h.b16 %v1188
  %v1272 = vunpack.c.l.b16 %v1189
  %v1273 = vunpack.c.h.b16 %v1189
  %v1274 = vunpack.c.l.b16 %v1190
  %v1275 = vunpack.c.h.b16 %v1190
  %v1276 = vunpack.c.l.b16 %v1191
  %v1277 = vunpack.c.h.b16 %v1191
  %v1278 = vunpack.c.l.b16 %v1192
  %v1279 = vunpack.c.h.b16 %v1192
  %v1280 = vunpack.c.l.b16 %v1193
  %v1281 = vunpack.c.h.b16 %v1193
  %v1282 = vunpack.c.l.b16 %v1194
  %v1283 = vunpack.c.h.b16 %v1194
  %v1284 = vunpack.c.l.b16 %v1195
  %v1285 = vunpack.c.h.b16 %v1195
  %v1286 = vunpack.c.l.b16 %v1196
  %v1287 = vunpack.c.h.b16 %v1196
  %v1288 = vunpack.c.l.b16 %v1197
  %v1289 = vunpack.c.h.b16 %v1197
  %v1290 = vunpack.c.l.b16 %v1198
  %v1291 = vunpack.c.h.b16 %v1198
  %v1292 = vunpack.c.l.b16 %v1199
  %v1293 = vunpack.c.h.b16 %v1199
  %v1294 = vunpack.c.l.b16 %v1200
  %v1295 = vunpack.c.h.b16 %v1200
  %v1296 = vunpack.c.l.b16 %v1201
  %v1297 = vunpack.c.h.b16 %v1201
  %v1298 = vpack.c.b16 %v1234, %v1234
  %v1299 = vpack.c.b16 %v1235, %v1235
  %v1300 = vpack.c.b16 %v1236, %v1236
  %v1301 = vpack.c.b16 %v1237, %v1237
  %v1302 = vpack.c.b16 %v1238, %v1238
  %v1303 = vpack.c.b16 %v1239, %v1239
  %v1304 = vpack.c.b16 %v1240, %v1240
  %v1305 = vpack.c.b16 %v1241, %v1241
  %v1306 = vpack.c.b16 %v1242, %v1242
  %v1307 = vpack.c.b16 %v1243, %v1243
  %v1308 = vpack.c.b16 %v1244, %v1244
  %v1309 = vpack.c.b16 %v1245, %v1245
  %v1310 = vpack.c.b16 %v1246, %v1246
  %v1311 = vpack.c.b16 %v1247, %v1247
  %v1312 = vpack.c.b16 %v1248, %v1248
  %v1313 = vpack.c.b16 %v1249, %v1249
  %v1314 = vpack.c.b16 %v1250, %v1250
  %v1315 = vpack.c.b16 %v1251, %v1251
  %v1316 = vpack.c.b16 %v1252, %v1252
  %v1317 = vpack.c.b16 %v1253, %v1253
  %v1318 = vpack.c.b16 %v1254, %v1254
  %v1319 = vpack.c.b16 %v1255, %v1255
  %v1320 = vpack.c.b16 %v1256, %v1256
  %v1321 = vpack.c.b16 %v1257, %v1257
  %v1322 = vpack.c.b16 %v1258, %v1258
  %v1323 = vpack.c.b16 %v1259, %v1259
  %v1324 = vpack.c.b16 %v1260, %v1260
  %v1325 = vpack.c.b16 %v1261, %v1261
  %v1326 = vpack.c.b16 %v1262, %v1262
  %v1327 = vpack.c.b16 %v1263, %v1263
  %v1328 = vpack.c.b16 %v1264, %v1264
  %v1329 = vpack.c.b16 %v1265, %v1265
  %v1330 = vpack.c.b16 %v1266, %v1266
  %v1331 = vpack.c.b16 %v1267, %v1267
  %v1332 = vpack.c.b16 %v1268, %v1268
  %v1333 = vpack.c.b16 %v1269, %v1269
  %v1334 = vpack.c.b16 %v1270, %v1270
  %v1335 = vpack.c.b16 %v1271, %v1271
  %v1336 = vpack.c.b16 %v1272, %v1272
  %v1337 = vpack.c.b16 %v1273, %v1273
  %v1338 = vpack.c.b16 %v1274, %v1274
  %v1339 = vpack.c.b16 %v1275, %v1275
  %v1340 = vpack.c.b16 %v1276, %v1276
  %v1341 = vpack.c.b16 %v1277, %v1277
  %v1342 = vpack.c.b16 %v1278, %v1278
  %v1343 = vpack.c.b16 %v1279, %v1279
  %v1344 = vpack.c.b16 %v1280, %v1280
  %v1345 = vpack.c.b16 %v1281, %v1281
  %v1346 = vpack.c.b16 %v1282, %v1282
  %v1347 = vpack.c.b16 %v1283, %v1283
  %v1348 = vpack.c.b16 %v1284, %v1284
  %v1349 = vpack.c.b16 %v1285, %v1285
  %v1350 = vpack.c.b16 %v1286, %v1286
  %v1351 = vpack.c.b16 %v1287, %v1287
  %v1352 = vpack.c.b16 %v1288, %v1288
  %v1353 = vpack.c.b16 %v1289, %v1289
  %v1354 = vpack.c.b16 %v1290, %v1290
  %v1355 = vpack.c.b16 %v1291, %v1291
  %v1356 = vpack.c.b16 %v1292, %v1292
  %v1357 = vpack.c.b16 %v1293, %v1293
  %v1358 = vpack.c.b16 %v1294, %v1294
  %v1359 = vpack.c.b16 %v1295, %v1295
  %v1360 = vpack.c.b16 %v1296, %v1296
  %v1361 = vpack.c.b16 %v1297, %v1297
  %vm1426 = vcmask 125952
  %1427 = vst.msk [vmem:[%s5] sm:$0xf] %vm1426, %v1298
  %1428 = vst.msk [vmem:[%s5 + $0x4] sm:$0xf] %vm1426, %v1299
  %1429 = vst.msk [vmem:[%s5 + $0x8] sm:$0xf] %vm1426, %v1300
  %1430 = vst.msk [vmem:[%s5 + $0xc] sm:$0xf] %vm1426, %v1301
  %1431 = vst.msk [vmem:[%s5 + $0x10] sm:$0xf] %vm1426, %v1302
  %1432 = vst.msk [vmem:[%s5 + $0x14] sm:$0xf] %vm1426, %v1303
  %1433 = vst.msk [vmem:[%s5 + $0x18] sm:$0xf] %vm1426, %v1304
  %1434 = vst.msk [vmem:[%s5 + $0x1c] sm:$0xf] %vm1426, %v1305
  %1435 = vst.msk [vmem:[%s5 + $0x20] sm:$0xf] %vm1426, %v1306
  %1436 = vst.msk [vmem:[%s5 + $0x24] sm:$0xf] %vm1426, %v1307
  %1437 = vst.msk [vmem:[%s5 + $0x28] sm:$0xf] %vm1426, %v1308
  %1438 = vst.msk [vmem:[%s5 + $0x2c] sm:$0xf] %vm1426, %v1309
  %1439 = vst.msk [vmem:[%s5 + $0x30] sm:$0xf] %vm1426, %v1310
  %1440 = vst.msk [vmem:[%s5 + $0x34] sm:$0xf] %vm1426, %v1311
  %1441 = vst.msk [vmem:[%s5 + $0x38] sm:$0xf] %vm1426, %v1312
  %1442 = vst.msk [vmem:[%s5 + $0x3c] sm:$0xf] %vm1426, %v1313
  %1443 = vst.msk [vmem:[%s5 + $0x40] sm:$0xf] %vm1426, %v1314
  %1444 = vst.msk [vmem:[%s5 + $0x44] sm:$0xf] %vm1426, %v1315
  %1445 = vst.msk [vmem:[%s5 + $0x48] sm:$0xf] %vm1426, %v1316
  %1446 = vst.msk [vmem:[%s5 + $0x4c] sm:$0xf] %vm1426, %v1317
  %1447 = vst.msk [vmem:[%s5 + $0x50] sm:$0xf] %vm1426, %v1318
  %1448 = vst.msk [vmem:[%s5 + $0x54] sm:$0xf] %vm1426, %v1319
  %1449 = vst.msk [vmem:[%s5 + $0x58] sm:$0xf] %vm1426, %v1320
  %1450 = vst.msk [vmem:[%s5 + $0x5c] sm:$0xf] %vm1426, %v1321
  %1451 = vst.msk [vmem:[%s5 + $0x60] sm:$0xf] %vm1426, %v1322
  %1452 = vst.msk [vmem:[%s5 + $0x64] sm:$0xf] %vm1426, %v1323
  %1453 = vst.msk [vmem:[%s5 + $0x68] sm:$0xf] %vm1426, %v1324
  %1454 = vst.msk [vmem:[%s5 + $0x6c] sm:$0xf] %vm1426, %v1325
  %1455 = vst.msk [vmem:[%s5 + $0x70] sm:$0xf] %vm1426, %v1326
  %1456 = vst.msk [vmem:[%s5 + $0x74] sm:$0xf] %vm1426, %v1327
  %1457 = vst.msk [vmem:[%s5 + $0x78] sm:$0xf] %vm1426, %v1328
  %1458 = vst.msk [vmem:[%s5 + $0x7c] sm:$0xf] %vm1426, %v1329
  %1459 = vst.msk [vmem:[%s5 + $0x80] sm:$0xf] %vm1426, %v1330
  %1460 = vst.msk [vmem:[%s5 + $0x84] sm:$0xf] %vm1426, %v1331
  %1461 = vst.msk [vmem:[%s5 + $0x88] sm:$0xf] %vm1426, %v1332
  %1462 = vst.msk [vmem:[%s5 + $0x8c] sm:$0xf] %vm1426, %v1333
  %1463 = vst.msk [vmem:[%s5 + $0x90] sm:$0xf] %vm1426, %v1334
  %1464 = vst.msk [vmem:[%s5 + $0x94] sm:$0xf] %vm1426, %v1335
  %1465 = vst.msk [vmem:[%s5 + $0x98] sm:$0xf] %vm1426, %v1336
  %1466 = vst.msk [vmem:[%s5 + $0x9c] sm:$0xf] %vm1426, %v1337
  %1467 = vst.msk [vmem:[%s5 + $0xa0] sm:$0xf] %vm1426, %v1338
  %1468 = vst.msk [vmem:[%s5 + $0xa4] sm:$0xf] %vm1426, %v1339
  %1469 = vst.msk [vmem:[%s5 + $0xa8] sm:$0xf] %vm1426, %v1340
  %1470 = vst.msk [vmem:[%s5 + $0xac] sm:$0xf] %vm1426, %v1341
  %1471 = vst.msk [vmem:[%s5 + $0xb0] sm:$0xf] %vm1426, %v1342
  %1472 = vst.msk [vmem:[%s5 + $0xb4] sm:$0xf] %vm1426, %v1343
  %1473 = vst.msk [vmem:[%s5 + $0xb8] sm:$0xf] %vm1426, %v1344
  %1474 = vst.msk [vmem:[%s5 + $0xbc] sm:$0xf] %vm1426, %v1345
  %1475 = vst.msk [vmem:[%s5 + $0xc0] sm:$0xf] %vm1426, %v1346
  %1476 = vst.msk [vmem:[%s5 + $0xc4] sm:$0xf] %vm1426, %v1347
  %1477 = vst.msk [vmem:[%s5 + $0xc8] sm:$0xf] %vm1426, %v1348
  %1478 = vst.msk [vmem:[%s5 + $0xcc] sm:$0xf] %vm1426, %v1349
  %1479 = vst.msk [vmem:[%s5 + $0xd0] sm:$0xf] %vm1426, %v1350
  %1480 = vst.msk [vmem:[%s5 + $0xd4] sm:$0xf] %vm1426, %v1351
  %1481 = vst.msk [vmem:[%s5 + $0xd8] sm:$0xf] %vm1426, %v1352
  %1482 = vst.msk [vmem:[%s5 + $0xdc] sm:$0xf] %vm1426, %v1353
  %1483 = vst.msk [vmem:[%s5 + $0xe0] sm:$0xf] %vm1426, %v1354
  %1484 = vst.msk [vmem:[%s5 + $0xe4] sm:$0xf] %vm1426, %v1355
  %1485 = vst.msk [vmem:[%s5 + $0xe8] sm:$0xf] %vm1426, %v1356
  %1486 = vst.msk [vmem:[%s5 + $0xec] sm:$0xf] %vm1426, %v1357
  %1487 = vst.msk [vmem:[%s5 + $0xf0] sm:$0xf] %vm1426, %v1358
  %1488 = vst.msk [vmem:[%s5 + $0xf4] sm:$0xf] %vm1426, %v1359
  %1489 = vst.msk [vmem:[%s5 + $0xf8] sm:$0xf] %vm1426, %v1360
  %1490 = vst.msk [vmem:[%s5 + $0xfc] sm:$0xf] %vm1426, %v1361
  // Predicated region
  $region22: #{encoder_mlp.1} parent=0 // pred_check
    _
  $region23: #{encoder_mlp.1} parent=0 // pred_check_branch
    %1492 = sbr.rel (0) target = $region25
  $region24: #{encoder_mlp.1} parent=0 // pred_region
    _
  $region25: #{encoder_mlp.1} parent=0 // pred_fallthru
    _
  // Predicated region
  $region26: #{encoder_mlp.1} parent=0 // pred_check
    _
  $region27: #{encoder_mlp.1} parent=0 // pred_check_branch
    %1494 = sbr.rel (0) target = $region29
  $region28: #{encoder_mlp.1} parent=0 // pred_region
    _
  $region29: #{encoder_mlp.1} parent=0 // pred_fallthru
    _

</llo_original>
